<compile_context>
chip_gen: v7x
topology: tpu7x:2x2x1
jax: 0.10.0
libtpu: 0.0.40
codegen_flags: <defaults>
</compile_context>

<pallas_src>
import math

import jax
import jax.numpy as jnp
from jax.experimental import pallas as pl
from jax.experimental.pallas import tpu as pltpu


def _round_up(x, m):
    return ((x + m - 1) // m) * m


def _tpu_generation():
    try:
        kind = jax.devices()[0].device_kind.lower()
    except Exception:
        return None
    for g in ("v7", "v6", "v5"):
        if g in kind:
            return g
    return None


def _vmem_capacity_bytes(gen):
    try:
        cap = int(pltpu.get_tpu_info().vmem_capacity_bytes)
        if cap > 0:
            return cap
    except Exception:
        pass
    return (64 << 20) if gen == "v7" else (128 << 20)


def _working_set_bytes(TB, TH, Dp, c_isz, o_isz, use_scratch):
    """Rough double-buffered VMEM working set for one grid step."""
    weights = 2 * 2 * Dp * TH * c_isz          # enc + dec weight tiles, 2 buffers
    xbuf = 2 * TB * Dp * c_isz                 # x tile, 2 buffers
    enc = 2 * TB * TH * o_isz                  # encoded output tile, 2 buffers
    dec = 2 * TB * Dp * o_isz                  # decoded output (resident)
    acc = TB * Dp * 4 if use_scratch else 0    # f32 accumulator scratch
    bias = 2 * 2 * (TH + Dp) * 4               # bias tiles
    return weights + xbuf + enc + dec + acc + bias


def _sae_kernel(x_ref, w_enc_ref, b_lat_ref, w_dec_ref, b_dec_ref,
                dec_ref, enc_ref, *acc_scratch):
    # x_ref     : (TB, Dp)  input tile (same block for every hidden step)
    # w_enc_ref : (Dp, TH)  K-major encoder weight tile (pre-transposed)
    # b_lat_ref : (1, TH)   latent bias tile (f32)
    # w_dec_ref : (TH, Dp)  K-major decoder weight tile (pre-transposed)
    # b_dec_ref : (1, Dp)   decoder output bias (f32)
    # dec_ref   : (TB, Dp)  decoded output (resident across hidden axis)
    # enc_ref   : (TB, TH)  encoded output tile
    # acc_scratch: optional f32 scratch (only when dec_ref is not f32)
    acc_ref = acc_scratch[0] if acc_scratch else dec_ref
    h = pl.program_id(1)

    @pl.when(h == 0)
    def _():
        acc_ref[...] = jnp.zeros_like(acc_ref)

    # Encoder: Linear(in -> hid, no bias) + latent bias + ReLU for this tile.
    pre = jnp.dot(x_ref[...], w_enc_ref[...],
                  preferred_element_type=jnp.float32)
    pre = pre + b_lat_ref[...]
    encoded = jnp.maximum(pre, 0.0)
    enc_ref[...] = encoded.astype(enc_ref.dtype)

    # Decoder partial sum over this hidden tile (f32 accumulation).
    acc_ref[...] += jnp.dot(encoded.astype(w_dec_ref.dtype), w_dec_ref[...],
                            preferred_element_type=jnp.float32)

    @pl.when(h == pl.num_programs(1) - 1)
    def _():
        dec_ref[...] = (acc_ref[...] + b_dec_ref[...]).astype(dec_ref.dtype)


def make_sae_forward(w_enc, b_lat, w_dec, b_dec, *,
                     compute_dtype=jnp.bfloat16, block_b=None, block_h=None):
    """Prepares (pads + pre-transposes) the SAE parameters ONCE and returns a
    forward(x) -> (decoded, encoded) closure.

    w_enc : (H, D_in)  PyTorch Linear layout
    b_lat : (H,)
    w_dec : (D_in, H)  PyTorch Linear layout
    b_dec : (D_in,)
    """
    H, D_in = int(w_enc.shape[0]), int(w_enc.shape[1])
    gen = _tpu_generation()
    vmem_cap = _vmem_capacity_bytes(gen)
    # Leave headroom for compiler-internal scratch: ~80% of physical,
    # capped at ~100 MiB on 128 MiB parts.
    vmem_budget = min(int(vmem_cap * 0.8), 100 << 20)

    compute_dtype = jnp.dtype(compute_dtype)
    c_isz = compute_dtype.itemsize
    sub = max(8, 32 // c_isz)              # sublane multiple: 8 f32, 16 bf16
    tb_cap = 256 if gen == "v5" else 512
    Dp = _round_up(D_in, 128)
    Hp128 = _round_up(H, 128)

    # Hidden tile: largest multiple of 128 (<=512) that divides the 128-padded
    # hidden size (no wasted trailing tile), shrunk if the worst-case working
    # set would not fit the VMEM budget.
    if block_h is not None:
        TH = _round_up(block_h, 128)
    else:
        cands = [t for t in range(min(512, Hp128), 0, -128)
                 if Hp128 % t == 0] or [128]
        TH = cands[-1]
        for t in cands:
            if _working_set_bytes(tb_cap, t, Dp, c_isz, 4, True) <= vmem_budget:
                TH = t
                break
    Hp = _round_up(Hp128, TH)

    # One-time weight pad + K-major pre-transpose (hoisted out of forward).
    w_enc_t = jnp.zeros((Dp, Hp), compute_dtype).at[:D_in, :H].set(
        jnp.asarray(w_enc).astype(compute_dtype).T)
    w_dec_t = jnp.zeros((Hp, Dp), compute_dtype).at[:H, :D_in].set(
        jnp.asarray(w_dec).astype(compute_dtype).T)
    b_lat_p = jnp.zeros((1, Hp), jnp.float32).at[0, :H].set(
        jnp.asarray(b_lat).astype(jnp.float32))
    b_dec_p = jnp.zeros((1, Dp), jnp.float32).at[0, :D_in].set(
        jnp.asarray(b_dec).astype(jnp.float32))

    def forward(x):
        B = x.shape[0]
        out_dtype = jnp.dtype(x.dtype)
        o_isz = out_dtype.itemsize
        use_scratch = out_dtype != jnp.dtype(jnp.float32)

        # Batch tile: dtype-aligned, capped for the roofline; on v7x ensure the
        # "parallel" axis has >= 2 tiles so both TensorCores get work.
        if block_b is not None:
            TB = _round_up(block_b, sub)
        else:
            TB = min(_round_up(B, sub), tb_cap)
            if gen == "v7" and _round_up(B, TB) // TB < 2:
                half = _round_up((TB + 1) // 2, sub)
                if half < TB:
                    TB = half
            while (_working_set_bytes(TB, TH, Dp, c_isz, o_isz, use_scratch)
                   > vmem_budget and TB > sub):
                TB = max(_round_up(TB // 2, sub), sub)
        Bp = _round_up(B, TB)
        grid = (Bp // TB, Hp // TH)

        x_p = jnp.zeros((Bp, Dp), compute_dtype).at[:B, :D_in].set(
            x.astype(compute_dtype))

        working = _working_set_bytes(TB, TH, Dp, c_isz, o_isz, use_scratch)
        vmem_limit = int(min(max(working + (4 << 20), 32 << 20), vmem_budget))

        n_bt = grid[0]
        cost = pl.CostEstimate(
            flops=4 * B * D_in * H,                        # two matmuls
            transcendentals=0,
            bytes_accessed=int(
                n_bt * 2 * Hp * Dp * c_isz    # weights re-streamed per batch tile
                + Bp * Dp * c_isz             # x
                + Bp * Hp * o_isz             # encoded out
                + Bp * Dp * o_isz             # decoded out
                + (Hp + Dp) * 4),             # biases
        )

        grid_spec = pltpu.PrefetchScalarGridSpec(
            num_scalar_prefetch=0,
            grid=grid,
            in_specs=[
                pl.BlockSpec((TB, Dp), lambda b, h: (b, 0)),   # x
                pl.BlockSpec((Dp, TH), lambda b, h: (0, h)),   # W_enc^T tile
                pl.BlockSpec((1, TH), lambda b, h: (0, h)),    # latent bias
                pl.BlockSpec((TH, Dp), lambda b, h: (h, 0)),   # W_dec^T tile
                pl.BlockSpec((1, Dp), lambda b, h: (0, 0)),    # decoder bias
            ],
            out_specs=(
                pl.BlockSpec((TB, Dp), lambda b, h: (b, 0)),   # decoded (resident)
                pl.BlockSpec((TB, TH), lambda b, h: (b, h)),   # encoded
            ),
            scratch_shapes=(
                [pltpu.VMEM((TB, Dp), jnp.float32)] if use_scratch else []),
        )

        decoded_p, encoded_p = pl.pallas_call(
            _sae_kernel,
            out_shape=(jax.ShapeDtypeStruct((Bp, Dp), out_dtype),   # decoded
                       jax.ShapeDtypeStruct((Bp, Hp), out_dtype)),  # encoded
            grid_spec=grid_spec,
            compiler_params=pltpu.CompilerParams(
                dimension_semantics=("parallel", "arbitrary"),
                vmem_limit_bytes=vmem_limit,
            ),
            cost_estimate=cost,
        )(x_p, w_enc_t, b_lat_p, w_dec_t, b_dec_p)

        return decoded_p[:B, :D_in], encoded_p[:B, :H]

    return forward


def sparse_autoencoder_forward(x, w_enc, b_lat, w_dec, b_dec, **kwargs):
    """Convenience one-shot wrapper (prefer make_sae_forward to amortize the
    weight preparation across many calls)."""
    return make_sae_forward(w_enc, b_lat, w_dec, b_dec, **kwargs)(x)


# ----------------------------------------------------------------------------
# Parameter init + references (mirrors the PyTorch module's shapes/semantics).
# ----------------------------------------------------------------------------
def _init_params(key, input_size, hidden_size):
    k1, k2, k3, k4 = jax.random.split(key, 4)
    bound_enc = 1.0 / math.sqrt(input_size)
    bound_dec = 1.0 / math.sqrt(hidden_size)
    w_enc = jax.random.uniform(k1, (hidden_size, input_size), jnp.float32,
                               -bound_enc, bound_enc)
    b_lat = jax.random.uniform(k2, (hidden_size,), jnp.float32,
                               -1.0 / math.sqrt(hidden_size),
                               1.0 / math.sqrt(hidden_size))
    w_dec = jax.random.uniform(k3, (input_size, hidden_size), jnp.float32,
                               -bound_dec, bound_dec)
    b_dec = jax.random.uniform(k4, (input_size,), jnp.float32,
                               -1.0 / math.sqrt(input_size),
                               1.0 / math.sqrt(input_size))
    return w_enc, b_lat, w_dec, b_dec


def _reference_f32(x, w_enc, b_lat, w_dec, b_dec):
    hi = jax.lax.Precision.HIGHEST
    enc = jnp.maximum(jnp.dot(x, w_enc.T, precision=hi) + b_lat, 0.0)
    dec = jnp.dot(enc, w_dec.T, precision=hi) + b_dec
    return dec, enc


def _reference_mixed(x, w_enc, b_lat, w_dec, b_dec, compute_dtype):
    """Reference mimicking the kernel's mixed-precision path (bf16 MXU inputs,
    f32 accumulation and biases)."""
    xd = x.astype(compute_dtype)
    we = w_enc.astype(compute_dtype)
    wd = w_dec.astype(compute_dtype)
    pre = jnp.dot(xd, we.T, preferred_element_type=jnp.float32)
    enc = jnp.maximum(pre + b_lat.astype(jnp.float32), 0.0)
    dec = jnp.dot(enc.astype(compute_dtype), wd.T,
                  preferred_element_type=jnp.float32)
    dec = dec + b_dec.astype(jnp.float32)
    return dec.astype(x.dtype), enc.astype(x.dtype)


if __name__ == "__main__":
    key = jax.random.PRNGKey(0)
    k_x, k_p, k_x2, k_p2 = jax.random.split(key, 4)

    # --- config 1: matches the original script (latent_size = 4), exact f32 --
    input_size = 4      # latent_size in the original script
    hidden_size = 32
    batch = 8

    x = jax.random.normal(k_x, (batch, input_size), jnp.float32)
    params = _init_params(k_p, input_size, hidden_size)

    fwd_f32 = make_sae_forward(*params, compute_dtype=jnp.float32)
    decoded, encoded = fwd_f32(x)
    jax.block_until_ready((decoded, encoded))

    dec_ref, enc_ref = _reference_f32(x, *params)
    assert jnp.allclose(encoded, enc_ref, atol=1e-4, rtol=1e-4)
    assert jnp.allclose(decoded, dec_ref, atol=1e-4, rtol=1e-4)

    # --- config 2: multi-tile grid, default bf16 MXU path with f32 accum -----
    input_size2, hidden_size2, batch2 = 4, 384, 32
    x2 = jax.random.normal(k_x2, (batch2, input_size2), jnp.float32)
    params2 = _init_params(k_p2, input_size2, hidden_size2)

    fwd_bf16 = make_sae_forward(*params2, compute_dtype=jnp.bfloat16,
                                block_b=16, block_h=128)   # grid = (2, 3)
    decoded2, encoded2 = fwd_bf16(x2)
    jax.block_until_ready((decoded2, encoded2))

    dec_ref2, enc_ref2 = _reference_mixed(x2, *params2, jnp.bfloat16)
    assert jnp.allclose(encoded2, enc_ref2, atol=2e-3, rtol=2e-3)
    assert jnp.allclose(decoded2, dec_ref2, atol=2e-3, rtol=2e-3)

    print("KERNEL_OK")
</pallas_src>

<mosaic_0001>
module attributes {stable_mosaic.version = 11 : i64} {
  func.func @_sae_kernel(%arg0: i32, %arg1: i32, %arg2: memref<8x128xf32, #tpu.memory_space<vmem>>, %arg3: memref<128x128xf32, #tpu.memory_space<vmem>>, %arg4: memref<1x128xf32, #tpu.memory_space<vmem>>, %arg5: memref<128x128xf32, #tpu.memory_space<vmem>>, %arg6: memref<1x128xf32, #tpu.memory_space<vmem>>, %arg7: memref<8x128xf32, #tpu.memory_space<vmem>>, %arg8: memref<8x128xf32, #tpu.memory_space<vmem>>) attributes {dimension_semantics = [#tpu.dimension_semantics<parallel>, #tpu.dimension_semantics<arbitrary>], iteration_bounds = array<i64: 1, 1>, scalar_prefetch = 0 : i64, scratch_operands = 0 : i64, tpu.core_type = #tpu.core_type<tc>, window_params = [{transform_indices = @transform_0, window_bounds = array<i64: 8, 128>}, {transform_indices = @transform_1, window_bounds = array<i64: 128, 128>}, {transform_indices = @transform_2, window_bounds = array<i64: 1, 128>}, {transform_indices = @transform_3, window_bounds = array<i64: 128, 128>}, {pipeline_mode = #tpu.pipeline_mode<synchronous>, transform_indices = @transform_4, window_bounds = array<i64: 1, 128>}, {transform_indices = @transform_5, window_bounds = array<i64: 8, 128>}, {transform_indices = @transform_6, window_bounds = array<i64: 8, 128>}]} {
    %c0_i32 = arith.constant 0 : i32
    %0 = arith.cmpi eq, %arg1, %c0_i32 : i32
    %1 = arith.extui %0 : i1 to i32
    %c0_i32_0 = arith.constant 0 : i32
    %2 = arith.cmpi ne, %1, %c0_i32_0 : i32
    scf.if %2 {
      %cst_18 = arith.constant 0.000000e+00 : f32
      %20 = vector.broadcast %cst_18 : f32 to vector<8x128xf32>
      %c0_19 = arith.constant 0 : index
      %c0_20 = arith.constant 0 : index
      %21 = vector.load %arg7[%c0_19, %c0_20] : memref<8x128xf32, #tpu.memory_space<vmem>>, vector<8x128xf32>
      tpu.vector_store %arg7[%c0_19, %c0_20], %20 {strides = array<i32>} : memref<8x128xf32, #tpu.memory_space<vmem>>, vector<8x128xf32>,
    } else {
    }
    %c0 = arith.constant 0 : index
    %c0_1 = arith.constant 0 : index
    %3 = vector.load %arg2[%c0, %c0_1] : memref<8x128xf32, #tpu.memory_space<vmem>>, vector<8x128xf32>
    %c0_2 = arith.constant 0 : index
    %c0_3 = arith.constant 0 : index
    %4 = vector.load %arg3[%c0_2, %c0_3] : memref<128x128xf32, #tpu.memory_space<vmem>>, vector<128x128xf32>
    %cst = arith.constant dense<0.000000e+00> : vector<8x128xf32>
    %5 = tpu.matmul %3, %4, %cst {dimension_numbers = #tpu.dot_dimension_numbers<[1], [0], [0], [1], [0, 0, 1, 1], [], []>} : vector<8x128xf32>, vector<128x128xf32>, vector<8x128xf32> -> vector<8x128xf32>
    %c0_4 = arith.constant 0 : index
    %c0_5 = arith.constant 0 : index
    %6 = vector.load %arg4[%c0_4, %c0_5] : memref<1x128xf32, #tpu.memory_space<vmem>>, vector<1x128xf32>
    %7 = vector.broadcast %6 : vector<1x128xf32> to vector<8x128xf32>
    %8 = arith.addf %5, %7 : vector<8x128xf32>
    %cst_6 = arith.constant 0.000000e+00 : f32
    %9 = vector.broadcast %cst_6 : f32 to vector<8x128xf32>
    %10 = arith.maximumf %8, %9 : vector<8x128xf32>
    %c0_7 = arith.constant 0 : index
    %c0_8 = arith.constant 0 : index
    %11 = vector.load %arg8[%c0_7, %c0_8] : memref<8x128xf32, #tpu.memory_space<vmem>>, vector<8x128xf32>
    tpu.vector_store %arg8[%c0_7, %c0_8], %10 {strides = array<i32>} : memref<8x128xf32, #tpu.memory_space<vmem>>, vector<8x128xf32>,
    %c0_9 = arith.constant 0 : index
    %c0_10 = arith.constant 0 : index
    %12 = vector.load %arg7[%c0_9, %c0_10] : memref<8x128xf32, #tpu.memory_space<vmem>>, vector<8x128xf32>
    %c0_11 = arith.constant 0 : index
    %c0_12 = arith.constant 0 : index
    %13 = vector.load %arg5[%c0_11, %c0_12] : memref<128x128xf32, #tpu.memory_space<vmem>>, vector<128x128xf32>
    %cst_13 = arith.constant dense<0.000000e+00> : vector<8x128xf32>
    %14 = tpu.matmul %10, %13, %cst_13 {dimension_numbers = #tpu.dot_dimension_numbers<[1], [0], [0], [1], [0, 0, 1, 1], [], []>} : vector<8x128xf32>, vector<128x128xf32>, vector<8x128xf32> -> vector<8x128xf32>
    %15 = arith.addf %12, %14 : vector<8x128xf32>
    %c0_14 = arith.constant 0 : index
    %c0_15 = arith.constant 0 : index
    %16 = vector.load %arg7[%c0_14, %c0_15] : memref<8x128xf32, #tpu.memory_space<vmem>>, vector<8x128xf32>
    tpu.vector_store %arg7[%c0_14, %c0_15], %15 {strides = array<i32>} : memref<8x128xf32, #tpu.memory_space<vmem>>, vector<8x128xf32>,
    %c0_i32_16 = arith.constant 0 : i32
    %17 = arith.cmpi eq, %arg1, %c0_i32_16 : i32
    %18 = arith.extui %17 : i1 to i32
    %c0_i32_17 = arith.constant 0 : i32
    %19 = arith.cmpi ne, %18, %c0_i32_17 : i32
    scf.if %19 {
      %c0_18 = arith.constant 0 : index
      %c0_19 = arith.constant 0 : index
      %20 = vector.load %arg7[%c0_18, %c0_19] : memref<8x128xf32, #tpu.memory_space<vmem>>, vector<8x128xf32>
      %c0_20 = arith.constant 0 : index
      %c0_21 = arith.constant 0 : index
      %21 = vector.load %arg6[%c0_20, %c0_21] : memref<1x128xf32, #tpu.memory_space<vmem>>, vector<1x128xf32>
      %22 = vector.broadcast %21 : vector<1x128xf32> to vector<8x128xf32>
      %23 = arith.addf %20, %22 : vector<8x128xf32>
      %c0_22 = arith.constant 0 : index
      %c0_23 = arith.constant 0 : index
      %24 = vector.load %arg7[%c0_22, %c0_23] : memref<8x128xf32, #tpu.memory_space<vmem>>, vector<8x128xf32>
      tpu.vector_store %arg7[%c0_22, %c0_23], %23 {strides = array<i32>} : memref<8x128xf32, #tpu.memory_space<vmem>>, vector<8x128xf32>,
    } else {
    }
    return
  }
  func.func @transform_0(%arg0: i32, %arg1: i32) -> (i32, i32) {
    %c0_i32 = arith.constant 0 : i32
    %c0_i32_0 = arith.constant 0 : i32
    return %arg0, %c0_i32 : i32, i32
  }
  func.func @transform_1(%arg0: i32, %arg1: i32) -> (i32, i32) {
    %c0_i32 = arith.constant 0 : i32
    %c0_i32_0 = arith.constant 0 : i32
    return %c0_i32, %arg1 : i32, i32
  }
  func.func @transform_2(%arg0: i32, %arg1: i32) -> (i32, i32) {
    %c0_i32 = arith.constant 0 : i32
    %c0_i32_0 = arith.constant 0 : i32
    return %c0_i32, %arg1 : i32, i32
  }
  func.func @transform_3(%arg0: i32, %arg1: i32) -> (i32, i32) {
    %c0_i32 = arith.constant 0 : i32
    %c0_i32_0 = arith.constant 0 : i32
    return %arg1, %c0_i32 : i32, i32
  }
  func.func @transform_4(%arg0: i32, %arg1: i32) -> (i32, i32) {
    %c0_i32 = arith.constant 0 : i32
    %c0_i32_0 = arith.constant 0 : i32
    %c0_i32_1 = arith.constant 0 : i32
    return %c0_i32, %c0_i32_0 : i32, i32
  }
  func.func @transform_5(%arg0: i32, %arg1: i32) -> (i32, i32) {
    %c0_i32 = arith.constant 0 : i32
    %c0_i32_0 = arith.constant 0 : i32
    return %arg0, %c0_i32 : i32, i32
  }
  func.func @transform_6(%arg0: i32, %arg1: i32) -> (i32, i32) {
    %c0_i32 = arith.constant 0 : i32
    return %arg0, %arg1 : i32, i32
  }
}

</mosaic_0001>

<llo_original>
// kernel: tpu_custom_call.1
$region0: #{tpu_custom_call.1}
  #allocation0 [shape = 'u32[]', space=smem, size = 0x4, offset = 0x4, fixed_abs, tag = 'smem constant byte address 0x4 - core index']
  #allocation1 [shape = 'u32[144,128]{1,0:T(1,128)}', space=vmem, size = 0x12000, scoped, tag = 'internal scratch']
  %s0 = inlined_call_operand.hbm [shape: f32[8,128], index: 0, kind: input, shape index: {}]
  %s1 = inlined_call_operand.hbm [shape: f32[128,128], index: 1, kind: input, shape index: {}]
  %s2 = inlined_call_operand.vmem [shape: f32[1,128], index: 2, kind: input, shape index: {}]
  %s3 = inlined_call_operand.hbm [shape: f32[128,128], index: 3, kind: input, shape index: {}]
  %s4 = inlined_call_operand.vmem [shape: f32[1,128], index: 4, kind: input, shape index: {}]
  %s5 = inlined_call_operand.hbm [shape: f32[8,128], index: 5, kind: output, shape index: {0}]
  %s6 = inlined_call_operand.hbm [shape: f32[8,128], index: 6, kind: output, shape index: {1}]
  %7 = xla_tuple %s5, %s6
  %s8 = sld [smem:[#allocation0]]
  $region58: #{tpu_custom_call.1} parent=0
    _
  %s10 = ssub.s32 1, %s8
  %s11 = scalar_select 0, %s10, %s8
  $region1: #{tpu_custom_call.1} parent=0
    #allocation2 [shape = 'u8[4096]{0}', space=vmem, size = 0x1000, scoped, tag = 'input window, operand 0, single buffered']
    #allocation3 [shape = 's32[1]{0}', space=sflag, size = 0x4, scoped, tag = 'scoped memory for tpu_custom_call.1']
    #allocation4 [shape = 's32[1]{0}', space=sflag, size = 0x4, scoped, tag = 'scoped memory for tpu_custom_call.1']
    #allocation5 [shape = 'u8[65536]{0}', space=vmem, size = 0x10000, scoped, tag = 'input window, operand 1, single buffered']
    #allocation6 [shape = 's32[1]{0}', space=sflag, size = 0x4, scoped, tag = 'scoped memory for tpu_custom_call.1']
    #allocation7 [shape = 'u8[65536]{0}', space=vmem, size = 0x10000, scoped, tag = 'input window, operand 3, single buffered']
    #allocation8 [shape = 'u8[4096]{0}', space=vmem, size = 0x1000, scoped, tag = 'output window, operand 0, single buffered']
    #allocation9 [shape = 'u8[4096]{0}', space=vmem, size = 0x1000, scoped, tag = 'output window, operand 1, single buffered']
    #allocation10 [shape = 's32[1]{0}', space=sflag, size = 0x4, scoped, tag = 'scoped memory for tpu_custom_call.1']
    %12 = vsyncpa [#allocation3], 0
    %13 = vsyncpa [#allocation6], 0
    %14 = vsyncpa [#allocation4], 0
    %15 = vsyncpa [#allocation10], 0
    // Predicated region
    $region2: #{tpu_custom_call.1} parent=1 // pred_check
      _
    $region3: #{tpu_custom_call.1} parent=1 // pred_check_branch
      %17 = sbr.rel (0) target = $region5
    $region4: #{tpu_custom_call.1} parent=1 // pred_region
      %s19 = ssub.s32 128, 128
      %20 = vsyncadd [#allocation3], %s19
      %s22 = sshll.u32 [#allocation2], 4
      %s23 = int_to_ptr.vmem [resolvable:$true] %s22
      %25 = dma.hbm_to_vmem [thread:$0]  %s0, 128, %s23, [#allocation3]
    $region5: #{tpu_custom_call.1} parent=1 // pred_fallthru
      _
    // Predicated region
    $region6: #{tpu_custom_call.1} parent=1 // pred_check
      _
    $region7: #{tpu_custom_call.1} parent=1 // pred_check_branch
      %27 = sbr.rel (0) target = $region9
    $region8: #{tpu_custom_call.1} parent=1 // pred_region
      %s29 = ssub.s32 2048, 2048
      %30 = vsyncadd [#allocation6], %s29
      %s31 = sshll.u32 [#allocation5], 4
      %s32 = int_to_ptr.vmem [resolvable:$true] %s31
      %37 = dma.hbm_to_vmem [thread:$0]  %s1, 2048, %s32, [#allocation6], 128, 128, 8
    $region9: #{tpu_custom_call.1} parent=1 // pred_fallthru
      _
    // Predicated region
    $region10: #{tpu_custom_call.1} parent=1 // pred_check
      _
    $region11: #{tpu_custom_call.1} parent=1 // pred_check_branch
      %39 = sbr.rel (0) target = $region13
    $region12: #{tpu_custom_call.1} parent=1 // pred_region
      _
    $region13: #{tpu_custom_call.1} parent=1 // pred_fallthru
      _
    // Predicated region
    $region14: #{tpu_custom_call.1} parent=1 // pred_check
      _
    $region15: #{tpu_custom_call.1} parent=1 // pred_check_branch
      %41 = sbr.rel (0) target = $region17
    $region16: #{tpu_custom_call.1} parent=1 // pred_region
      %s43 = ssub.s32 2048, 2048
      %44 = vsyncadd [#allocation6], %s43
      %s45 = sshll.u32 [#allocation7], 4
      %s46 = int_to_ptr.vmem [resolvable:$true] %s45
      %51 = dma.hbm_to_vmem [thread:$0]  %s3, 2048, %s46, [#allocation6], 128, 128, 8
    $region17: #{tpu_custom_call.1} parent=1 // pred_fallthru
      _
    // Predicated region
    $region18: #{tpu_custom_call.1} parent=1 // pred_check
      _
    $region19: #{tpu_custom_call.1} parent=1 // pred_check_branch
      %53 = sbr.rel (0) target = $region21
    $region20: #{tpu_custom_call.1} parent=1 // pred_region
      _
    $region21: #{tpu_custom_call.1} parent=1 // pred_fallthru
      _
    // Predicated region
    $region22: #{tpu_custom_call.1} parent=1 // pred_check
      _
    $region23: #{tpu_custom_call.1} parent=1 // pred_check_branch
      %55 = sbr.rel (0) target = $region25
    $region24: #{tpu_custom_call.1} parent=1 // pred_region
      %56 = dma.done [#allocation3], 128
    $region25: #{tpu_custom_call.1} parent=1 // pred_fallthru
      _
    // Predicated region
    $region26: #{tpu_custom_call.1} parent=1 // pred_check
      _
    $region27: #{tpu_custom_call.1} parent=1 // pred_check_branch
      %58 = sbr.rel (0) target = $region29
    $region28: #{tpu_custom_call.1} parent=1 // pred_region
      %59 = dma.done [#allocation6], 2048
    $region29: #{tpu_custom_call.1} parent=1 // pred_fallthru
      _
    // Predicated region
    $region30: #{tpu_custom_call.1} parent=1 // pred_check
      _
    $region31: #{tpu_custom_call.1} parent=1 // pred_check_branch
      %61 = sbr.rel (0) target = $region33
    $region32: #{tpu_custom_call.1} parent=1 // pred_region
      %62 = dma.done [#allocation6], 2048
    $region33: #{tpu_custom_call.1} parent=1 // pred_fallthru
      _
    %p63 = scmp.eq.s32.totalorder 0, 0
    // Predicated region
    $region34: #{tpu_custom_call.1} parent=1 // pred_check
      %p64 = pneg %p63
    $region35: #{tpu_custom_call.1} parent=1 // pred_check_branch
      %66 = sbr.rel (%p64) target = $region37
    $region36: #{tpu_custom_call.1} parent=1 // pred_region
      %67 = vst [vmem:[#allocation8] sm:$0xff] 0.0
    $region37: #{tpu_custom_call.1} parent=1 // pred_fallthru
      _
    %v68 = vld [vmem:[#allocation2] sm:$0xff]
    %v69 = vld [vmem:[#allocation5] sm:$0xff]
    %v70 = vld [vmem:[#allocation5 + $0x8] sm:$0xff]
    %v71 = vld [vmem:[#allocation5 + $0x10] sm:$0xff]
    %v72 = vld [vmem:[#allocation5 + $0x18] sm:$0xff]
    %v73 = vld [vmem:[#allocation5 + $0x20] sm:$0xff]
    %v74 = vld [vmem:[#allocation5 + $0x28] sm:$0xff]
    %v75 = vld [vmem:[#allocation5 + $0x30] sm:$0xff]
    %v76 = vld [vmem:[#allocation5 + $0x38] sm:$0xff]
    %v77 = vld [vmem:[#allocation5 + $0x40] sm:$0xff]
    %v78 = vld [vmem:[#allocation5 + $0x48] sm:$0xff]
    %v79 = vld [vmem:[#allocation5 + $0x50] sm:$0xff]
    %v80 = vld [vmem:[#allocation5 + $0x58] sm:$0xff]
    %v81 = vld [vmem:[#allocation5 + $0x60] sm:$0xff]
    %v82 = vld [vmem:[#allocation5 + $0x68] sm:$0xff]
    %v83 = vld [vmem:[#allocation5 + $0x70] sm:$0xff]
    %v84 = vld [vmem:[#allocation5 + $0x78] sm:$0xff]
    %v85 = vld [vmem:[%s2] sm:$0x1]
    %v87 = vlaneseq
    %v88 = vshrl.u32 %v87, 7
    %v89 = vsub.s32 0, %v88
    %v90 = vrot.slane %v85, %v89
    %92 = vmatprep.subr.mxu0 0.0
    %93 = vmatpush1.msra.mxu0 %v69
    %94 = vmatprep.subr.mxu0 0.0
    %95 = vmatpush1.msra.mxu0 %v70
    %96 = vmatprep.subr.mxu0 0.0
    %97 = vmatpush1.msra.mxu0 %v71
    %98 = vmatprep.subr.mxu0 0.0
    %99 = vmatpush1.msra.mxu0 %v72
    %100 = vmatprep.subr.mxu0 0.0
    %101 = vmatpush1.msra.mxu0 %v73
    %102 = vmatprep.subr.mxu0 0.0
    %103 = vmatpush1.msra.mxu0 %v74
    %104 = vmatprep.subr.mxu0 0.0
    %105 = vmatpush1.msra.mxu0 %v75
    %106 = vmatprep.subr.mxu0 0.0
    %107 = vmatpush1.msra.mxu0 %v76
    %108 = vmatprep.subr.mxu0 0.0
    %109 = vmatpush1.msra.mxu0 %v77
    %110 = vmatprep.subr.mxu0 0.0
    %111 = vmatpush1.msra.mxu0 %v78
    %112 = vmatprep.subr.mxu0 0.0
    %113 = vmatpush1.msra.mxu0 %v79
    %114 = vmatprep.subr.mxu0 0.0
    %115 = vmatpush1.msra.mxu0 %v80
    %116 = vmatprep.subr.mxu0 0.0
    %117 = vmatpush1.msra.mxu0 %v81
    %118 = vmatprep.subr.mxu0 0.0
    %119 = vmatpush1.msra.mxu0 %v82
    %120 = vmatprep.subr.mxu0 0.0
    %121 = vmatpush1.msra.mxu0 %v83
    %122 = vmatprep.subr.mxu0 0.0
    %123 = vmatpush1.msra.mxu0 %v84
    %124 = vmatprep.subr.mxu0 0.0
    %125 = vmatpush1.msra.mxu0 0.0
    %126 = vmatprep.subr.mxu0 0.0
    %127 = vmatpush1.msra.mxu0 0.0
    %128 = vmatprep.subr.mxu0 0.0
    %129 = vmatpush1.msra.mxu0 0.0
    %130 = vmatprep.subr.mxu0 0.0
    %131 = vmatpush1.msra.mxu0 0.0
    %132 = vmatprep.subr.mxu0 0.0
    %133 = vmatpush1.msra.mxu0 0.0
    %134 = vmatprep.subr.mxu0 0.0
    %135 = vmatpush1.msra.mxu0 0.0
    %136 = vmatprep.subr.mxu0 0.0
    %137 = vmatpush1.msra.mxu0 0.0
    %138 = vmatprep.subr.mxu0 0.0
    %139 = vmatpush1.msra.mxu0 0.0
    %140 = vmatprep.subr.mxu0 0.0
    %141 = vmatpush1.msra.mxu0 0.0
    %142 = vmatprep.subr.mxu0 0.0
    %143 = vmatpush1.msra.mxu0 0.0
    %144 = vmatprep.subr.mxu0 0.0
    %145 = vmatpush1.msra.mxu0 0.0
    %146 = vmatprep.subr.mxu0 0.0
    %147 = vmatpush1.msra.mxu0 0.0
    %148 = vmatprep.subr.mxu0 0.0
    %149 = vmatpush1.msra.mxu0 0.0
    %150 = vmatprep.subr.mxu0 0.0
    %151 = vmatpush1.msra.mxu0 0.0
    %152 = vmatprep.subr.mxu0 0.0
    %153 = vmatpush1.msra.mxu0 0.0
    %154 = vmatprep.subr.mxu0 0.0
    %155 = vmatpush1.msra.mxu0 0.0
    %156 = vmatprep.mubr.f32.mxu0 0.0
    %157 = vmatmul.mubr.f32.gmra.mrb[0].mxu0 %v68
    %v158 = vpop.f32.mrb[0].mxu0
    %v159 = vadd.f32 %v90, %v158
    %v160 = vpop.f32.mrb[0].mxu0
    %161 = vdwg.mxu0
    %v162 = vmax.f32 %v159, 0.0
    %163 = vst [vmem:[#allocation9] sm:$0xff] %v162
    %v164 = vld [vmem:[#allocation8] sm:$0xff]
    %v165 = vld [vmem:[#allocation7] sm:$0xff]
    %v166 = vld [vmem:[#allocation7 + $0x8] sm:$0xff]
    %v167 = vld [vmem:[#allocation7 + $0x10] sm:$0xff]
    %v168 = vld [vmem:[#allocation7 + $0x18] sm:$0xff]
    %v169 = vld [vmem:[#allocation7 + $0x20] sm:$0xff]
    %v170 = vld [vmem:[#allocation7 + $0x28] sm:$0xff]
    %v171 = vld [vmem:[#allocation7 + $0x30] sm:$0xff]
    %v172 = vld [vmem:[#allocation7 + $0x38] sm:$0xff]
    %v173 = vld [vmem:[#allocation7 + $0x40] sm:$0xff]
    %v174 = vld [vmem:[#allocation7 + $0x48] sm:$0xff]
    %v175 = vld [vmem:[#allocation7 + $0x50] sm:$0xff]
    %v176 = vld [vmem:[#allocation7 + $0x58] sm:$0xff]
    %v177 = vld [vmem:[#allocation7 + $0x60] sm:$0xff]
    %v178 = vld [vmem:[#allocation7 + $0x68] sm:$0xff]
    %v179 = vld [vmem:[#allocation7 + $0x70] sm:$0xff]
    %v180 = vld [vmem:[#allocation7 + $0x78] sm:$0xff]
    %181 = vmatprep.subr.mxu0 0.0
    %182 = vmatpush1.msra.mxu0 %v165
    %183 = vmatprep.subr.mxu0 0.0
    %184 = vmatpush1.msra.mxu0 %v166
    %185 = vmatprep.subr.mxu0 0.0
    %186 = vmatpush1.msra.mxu0 %v167
    %187 = vmatprep.subr.mxu0 0.0
    %188 = vmatpush1.msra.mxu0 %v168
    %189 = vmatprep.subr.mxu0 0.0
    %190 = vmatpush1.msra.mxu0 %v169
    %191 = vmatprep.subr.mxu0 0.0
    %192 = vmatpush1.msra.mxu0 %v170
    %193 = vmatprep.subr.mxu0 0.0
    %194 = vmatpush1.msra.mxu0 %v171
    %195 = vmatprep.subr.mxu0 0.0
    %196 = vmatpush1.msra.mxu0 %v172
    %197 = vmatprep.subr.mxu0 0.0
    %198 = vmatpush1.msra.mxu0 %v173
    %199 = vmatprep.subr.mxu0 0.0
    %200 = vmatpush1.msra.mxu0 %v174
    %201 = vmatprep.subr.mxu0 0.0
    %202 = vmatpush1.msra.mxu0 %v175
    %203 = vmatprep.subr.mxu0 0.0
    %204 = vmatpush1.msra.mxu0 %v176
    %205 = vmatprep.subr.mxu0 0.0
    %206 = vmatpush1.msra.mxu0 %v177
    %207 = vmatprep.subr.mxu0 0.0
    %208 = vmatpush1.msra.mxu0 %v178
    %209 = vmatprep.subr.mxu0 0.0
    %210 = vmatpush1.msra.mxu0 %v179
    %211 = vmatprep.subr.mxu0 0.0
    %212 = vmatpush1.msra.mxu0 %v180
    %213 = vmatprep.subr.mxu0 0.0
    %214 = vmatpush1.msra.mxu0 0.0
    %215 = vmatprep.subr.mxu0 0.0
    %216 = vmatpush1.msra.mxu0 0.0
    %217 = vmatprep.subr.mxu0 0.0
    %218 = vmatpush1.msra.mxu0 0.0
    %219 = vmatprep.subr.mxu0 0.0
    %220 = vmatpush1.msra.mxu0 0.0
    %221 = vmatprep.subr.mxu0 0.0
    %222 = vmatpush1.msra.mxu0 0.0
    %223 = vmatprep.subr.mxu0 0.0
    %224 = vmatpush1.msra.mxu0 0.0
    %225 = vmatprep.subr.mxu0 0.0
    %226 = vmatpush1.msra.mxu0 0.0
    %227 = vmatprep.subr.mxu0 0.0
    %228 = vmatpush1.msra.mxu0 0.0
    %229 = vmatprep.subr.mxu0 0.0
    %230 = vmatpush1.msra.mxu0 0.0
    %231 = vmatprep.subr.mxu0 0.0
    %232 = vmatpush1.msra.mxu0 0.0
    %233 = vmatprep.subr.mxu0 0.0
    %234 = vmatpush1.msra.mxu0 0.0
    %235 = vmatprep.subr.mxu0 0.0
    %236 = vmatpush1.msra.mxu0 0.0
    %237 = vmatprep.subr.mxu0 0.0
    %238 = vmatpush1.msra.mxu0 0.0
    %239 = vmatprep.subr.mxu0 0.0
    %240 = vmatpush1.msra.mxu0 0.0
    %241 = vmatprep.subr.mxu0 0.0
    %242 = vmatpush1.msra.mxu0 0.0
    %243 = vmatprep.subr.mxu0 0.0
    %244 = vmatpush1.msra.mxu0 0.0
    %245 = vmatprep.mubr.f32.mxu0 0.0
    %246 = vmatmul.mubr.f32.gmra.mrb[0].mxu0 %v162
    %v247 = vpop.f32.mrb[0].mxu0
    %v248 = vadd.f32 0.0, %v247
    %v249 = vpop.f32.mrb[0].mxu0
    %250 = vdwg.mxu0
    %v251 = vadd.f32 %v164, %v248
    %252 = vst [vmem:[#allocation8] sm:$0xff] %v251
    // Predicated region
    $region38: #{tpu_custom_call.1} parent=1 // pred_check
      %p253 = pneg %p63
    $region39: #{tpu_custom_call.1} parent=1 // pred_check_branch
      %255 = sbr.rel (%p253) target = $region41
    $region40: #{tpu_custom_call.1} parent=1 // pred_region
      %v256 = vld [vmem:[#allocation8] sm:$0xff]
      %v257 = vld [vmem:[%s4] sm:$0x1]
      %v259 = vlaneseq
      %v260 = vshrl.u32 %v259, 7
      %v261 = vsub.s32 0, %v260
      %v262 = vrot.slane %v257, %v261
      %v264 = vadd.f32 %v256, %v262
      %265 = vst [vmem:[#allocation8] sm:$0xff] %v264
    $region41: #{tpu_custom_call.1} parent=1 // pred_fallthru
      _
    // Predicated region
    $region42: #{tpu_custom_call.1} parent=1 // pred_check
      _
    $region43: #{tpu_custom_call.1} parent=1 // pred_check_branch
      %267 = sbr.rel (0) target = $region45
    $region44: #{tpu_custom_call.1} parent=1 // pred_region
      %s269 = ssub.s32 128, 128
      %270 = vsyncadd [#allocation4], %s269
      %s272 = sshll.u32 [#allocation8], 4
      %s273 = int_to_ptr.vmem [resolvable:$true] %s272
      %275 = dma.vmem_to_hbm [thread:$0]  %s273, 128, %s5, [#allocation4]
    $region45: #{tpu_custom_call.1} parent=1 // pred_fallthru
      _
    // Predicated region
    $region46: #{tpu_custom_call.1} parent=1 // pred_check
      _
    $region47: #{tpu_custom_call.1} parent=1 // pred_check_branch
      %277 = sbr.rel (0) target = $region49
    $region48: #{tpu_custom_call.1} parent=1 // pred_region
      %s279 = ssub.s32 128, 128
      %280 = vsyncadd [#allocation10], %s279
      %s282 = sshll.u32 [#allocation9], 4
      %s283 = int_to_ptr.vmem [resolvable:$true] %s282
      %285 = dma.vmem_to_hbm [thread:$0]  %s283, 128, %s6, [#allocation10]
    $region49: #{tpu_custom_call.1} parent=1 // pred_fallthru
      _
    // Predicated region
    $region50: #{tpu_custom_call.1} parent=1 // pred_check
      _
    $region51: #{tpu_custom_call.1} parent=1 // pred_check_branch
      %287 = sbr.rel (0) target = $region53
    $region52: #{tpu_custom_call.1} parent=1 // pred_region
      %288 = dma.done [#allocation4], 128
    $region53: #{tpu_custom_call.1} parent=1 // pred_fallthru
      _
    // Predicated region
    $region54: #{tpu_custom_call.1} parent=1 // pred_check
      _
    $region55: #{tpu_custom_call.1} parent=1 // pred_check_branch
      %290 = sbr.rel (0) target = $region57
    $region56: #{tpu_custom_call.1} parent=1 // pred_region
      %291 = dma.done [#allocation10], 128
    $region57: #{tpu_custom_call.1} parent=1 // pred_fallthru
      _
    %292 = vsyncpa [#allocation3], 1
    %293 = vsyncpa [#allocation6], 1
    %294 = vsyncpa [#allocation4], 1
    %295 = vsyncpa [#allocation10], 1

</llo_original>
